<compile_context>
chip_gen: v7x
topology: tpu7x:2x2x1
jax: 0.10.0
libtpu: 0.0.40
codegen_flags: <defaults>
</compile_context>

<pallas_src>
import functools
import math

import jax
import jax.numpy as jnp
from jax import lax
from jax.experimental import pallas as pl
from jax.experimental.pallas import tpu as pltpu


# ---------------------------------------------------------------------------
# In-kernel helpers (pure jnp/lax: lower on Mosaic and in interpret mode)
# ---------------------------------------------------------------------------

def _pe_rows(n_rows, width, d_model, row_start):
    """Sinusoidal PE for rows [row_start, row_start + n_rows), lane width `width`.

    Single sin per element (cos via +pi/2 phase); lane-invariant math (mod, exp,
    phase) computed once on a (1, width) row and broadcast over rows.
    width == d_model -> lane index IS the channel (no `%` at all);
    otherwise (flattened (S, B*D) layout) channel = lane % d_model.
    """
    lane = lax.broadcasted_iota(jnp.int32, (1, width), 1)
    chan = lane if width == d_model else lane % d_model
    odd = chan % 2
    inv_freq = jnp.exp((chan - odd).astype(jnp.float32) *
                       jnp.float32(-math.log(10000.0) / d_model))
    phase = odd.astype(jnp.float32) * jnp.float32(math.pi / 2.0)
    pos = (lax.broadcasted_iota(jnp.int32, (n_rows, 1), 0) + row_start).astype(jnp.float32)
    return jnp.sin(pos * inv_freq + phase)                    # (n_rows, width) f32


def _dropout_threshold(p_drop):
    """31-bit keep threshold: keep iff low-31-bits(hash) >= thresh  (P[keep]=1-p)."""
    return jnp.int32(min(int(round(p_drop * (1 << 31))), (1 << 31) - 1))


def _keep_mask(idx, seed, thresh):
    """Stateless dropout keep-mask: murmur-style int32 mix of (global index, seed),
    thresholded on its low 31 bits.  Pure int ops -> portable (TPU + interpret).
    TODO(synk): not bit-matched to torch's dropout RNG; on TPU-only builds
    pltpu.prng_random_bits would save a few VALU ops per element.
    """
    h = idx * jnp.int32(-1640531527) + seed        # 0x9E3779B9 (wrapping int32 mul)
    h = h ^ lax.shift_right_logical(h, 15)
    h = h * jnp.int32(-2048144789)                 # 0x85EBCA6B
    h = h ^ lax.shift_right_logical(h, 13)
    h = h * jnp.int32(-1028477387)                 # 0xC2B2AE35
    h = h ^ lax.shift_right_logical(h, 16)
    return (h & jnp.int32(0x7FFFFFFF)) >= thresh


# ---------------------------------------------------------------------------
# Kernel
# ---------------------------------------------------------------------------

def _posenc_kernel(*refs, d_model, total_width, batch_per_block,
                   block_rows, block_cols, p_drop, training):
    if training:
        seed_ref, x_ref, o_ref = refs
    else:
        x_ref, o_ref = refs
    rows, width = x_ref.shape
    row0 = pl.program_id(0) * block_rows

    # --- PE, regenerated on-chip (never stored in / read from HBM) ---
    if batch_per_block > 1:
        # One sin per (position, channel); replicate across the batch with cheap
        # lane-aligned copies (each piece is a multiple of 128 lanes wide).
        pe_d = _pe_rows(rows, d_model, d_model, row0)          # (rows, D)
        pe = jnp.concatenate([pe_d] * batch_per_block, axis=1)  # (rows, width)
    else:
        # Small-d_model flattened path: channel = lane % d_model (batch broadcast).
        pe = _pe_rows(rows, width, d_model, row0)

    y = x_ref[...].astype(jnp.float32) + pe

    if not training:
        o_ref[...] = y.astype(o_ref.dtype)
        return

    # --- Dropout: threshold-compare the raw hash bits; fold 1/(1-p) into one mul ---
    col0 = pl.program_id(1) * block_cols
    grow = lax.broadcasted_iota(jnp.int32, (rows, 1), 0) + row0
    lane = lax.broadcasted_iota(jnp.int32, (1, width), 1) + col0
    idx = grow * jnp.int32(total_width) + lane                 # global element index
    keep = _keep_mask(idx, seed_ref[0], _dropout_threshold(p_drop))
    scale = jnp.float32(1.0 / (1.0 - p_drop))
    o_ref[...] = jnp.where(keep, y * scale, jnp.float32(0.0)).astype(o_ref.dtype)


# ---------------------------------------------------------------------------
# Wrapper
# ---------------------------------------------------------------------------

def _pick_row_tile(S, row_bytes, target_bytes):
    """Rows per block: multiple of 8 (sublane rule); ~target_bytes per block.
    Tiny inputs run as a single grid step (per-step overhead ~0.35us dominates);
    medium/large inputs keep >= 2 steps so v7x's two TCs both get work."""
    if S <= 8 or S * row_bytes <= (1 << 20):
        return int(S)
    budget = max(8, (target_bytes // row_bytes) // 8 * 8)
    half = ((S + 1) // 2 + 7) // 8 * 8            # round-up-to-8 of ceil(S/2)
    return int(max(8, min(budget, half)))


def positional_encoding(x, *, p_drop=0.1, training=False, seed=0, max_len=6000):
    """x: (seq_len, batch, d_model), seq-first like the PyTorch module."""
    S, B, D = x.shape
    assert D % 2 == 0, "d_model must be even (as required by the PyTorch module)"
    assert S <= max_len, "sequence longer than the module's max_len"

    W = B * D
    itemsize = jnp.dtype(x.dtype).itemsize
    x2 = x.reshape(S, W)                          # lane-dense view, free reshape

    target = 4 << 20                              # ~4 MiB blocks (>=85% of roofline)
    concat_path = (D % 128 == 0) and (B > 1)      # amortize sin over the batch

    # Lane (per-batch) tiling only when one 8-row slab would exceed the target,
    # so very wide rows cannot blow v7x's 64 MiB VMEM.
    if concat_path and 8 * W * itemsize > target:
        bpb = max(1, target // (8 * D * itemsize))
        block_cols = int(bpb * D)                 # multiple of 128 (D % 128 == 0)
    else:
        bpb = B if concat_path else 1
        block_cols = W
    n_w = pl.cdiv(W, block_cols)

    block_rows = _pick_row_tile(S, block_cols * itemsize, target)
    n_r = pl.cdiv(S, block_rows)

    block_bytes = block_rows * block_cols * itemsize
    # double-buffered in + out + intermediate headroom; capped under v7x's 64 MiB.
    vmem_limit = int(max(32 << 20, min(4 * block_bytes + (8 << 20), 56 << 20)))
    compiler_params = pltpu.CompilerParams(
        dimension_semantics=("parallel", "parallel"),
        vmem_limit_bytes=vmem_limit)

    out_shape = jax.ShapeDtypeStruct((S, W), x.dtype)
    block = (block_rows, block_cols)

    training = bool(training) and float(p_drop) > 0.0
    kernel = functools.partial(
        _posenc_kernel, d_model=D, total_width=W,
        batch_per_block=int(bpb) if concat_path else 1,
        block_rows=block_rows, block_cols=block_cols,
        p_drop=float(p_drop), training=training)

    if not training:
        out2 = pl.pallas_call(
            kernel,
            out_shape=out_shape,
            grid_spec=pltpu.PrefetchScalarGridSpec(
                num_scalar_prefetch=0,
                grid=(n_r, n_w),
                in_specs=[pl.BlockSpec(block, lambda i, j: (i, j))],
                out_specs=pl.BlockSpec(block, lambda i, j: (i, j)),
            ),
            compiler_params=compiler_params,
        )(x2)
    else:
        seed_arr = jnp.asarray([seed], dtype=jnp.int32)
        out2 = pl.pallas_call(
            kernel,
            out_shape=out_shape,
            grid_spec=pltpu.PrefetchScalarGridSpec(
                num_scalar_prefetch=1,            # seed lands in SMEM before the grid
                grid=(n_r, n_w),
                in_specs=[pl.BlockSpec(block, lambda i, j, seed_ref: (i, j))],
                out_specs=pl.BlockSpec(block, lambda i, j, seed_ref: (i, j)),
            ),
            compiler_params=compiler_params,
        )(seed_arr, x2)

    return out2.reshape(S, B, D)


def positional_encoding_reference(x):
    """Pure-JAX reference matching the PyTorch module in eval mode."""
    S, B, D = x.shape
    position = jnp.arange(S, dtype=jnp.float32)[:, None]
    div_term = jnp.exp(jnp.arange(0, D, 2, dtype=jnp.float32) *
                       (-math.log(10000.0) / D))
    ang = position * div_term                                   # (S, D//2)
    pe = jnp.stack([jnp.sin(ang), jnp.cos(ang)], axis=-1).reshape(S, D)
    return x + pe[:, None, :].astype(x.dtype)


if __name__ == "__main__":
    k1, k2 = jax.random.split(jax.random.PRNGKey(0))

    # Case 1: small d_model (< 128) -> flattened lane%d path, eval mode.
    S, B, D = 8, 2, 32
    x1 = jax.random.normal(k1, (S, B, D), dtype=jnp.float32)
    y1 = jax.block_until_ready(positional_encoding(x1, training=False))
    ref1 = positional_encoding_reference(x1)
    assert y1.shape == (S, B, D)
    assert jnp.allclose(y1, ref1, atol=1e-4, rtol=1e-4), "eval mismatch (mod path)"

    # Case 2: transformer-sized d_model (128) -> concat path (sin amortized over batch).
    S2, B2, D2 = 16, 2, 128
    x2 = jax.random.normal(k2, (S2, B2, D2), dtype=jnp.float32)
    y2 = jax.block_until_ready(positional_encoding(x2, training=False))
    ref2 = positional_encoding_reference(x2)
    assert jnp.allclose(y2, ref2, atol=1e-4, rtol=1e-4), "eval mismatch (concat path)"

    # Case 3: training mode (dropout p=0.1), checked against a pure-JAX replica of the
    # in-kernel mask.  (Not bit-matched to torch's RNG stream; see TODO above.)
    p = 0.1
    y3 = jax.block_until_ready(positional_encoding(x1, training=True, seed=7, p_drop=p))
    idx = jnp.arange(S * B * D, dtype=jnp.int32).reshape(S, B, D)
    keep = _keep_mask(idx, jnp.int32(7), _dropout_threshold(p))
    ref3 = jnp.where(keep, ref1 / (1.0 - p), 0.0)
    assert y3.shape == (S, B, D)
    assert jnp.allclose(y3, ref3, atol=1e-4, rtol=1e-4), "train mismatch (dropout path)"

    print("KERNEL_OK")
</pallas_src>

<mosaic_0001>
module attributes {stable_mosaic.version = 11 : i64} {
  func.func @_posenc_kernel(%arg0: i32, %arg1: i32, %arg2: memref<8x64xf32, #tpu.memory_space<vmem>>, %arg3: memref<8x64xf32, #tpu.memory_space<vmem>>) attributes {dimension_semantics = [#tpu.dimension_semantics<parallel>, #tpu.dimension_semantics<parallel>], iteration_bounds = array<i64: 1, 1>, scalar_prefetch = 0 : i64, scratch_operands = 0 : i64, tpu.core_type = #tpu.core_type<tc>, window_params = [{transform_indices = @transform_0, window_bounds = array<i64: 8, 64>}, {transform_indices = @transform_1, window_bounds = array<i64: 8, 64>}]} {
    %c8_i32 = arith.constant 8 : i32
    %0 = arith.muli %arg0, %c8_i32 : i32
    %1 = tpu.iota {dimensions = array<i32: 1>} : vector<1x64xi32>
    %c32_i32 = arith.constant 32 : i32
    %c0_i32 = arith.constant 0 : i32
    %2 = arith.cmpi eq, %c32_i32, %c0_i32 : i32
    %c1_i32 = arith.constant 1 : i32
    %3 = arith.select %2, %c1_i32, %c32_i32 : i32
    %4 = vector.broadcast %3 : i32 to vector<1x64xi32>
    %5 = arith.remsi %1, %4 : vector<1x64xi32>
    %c0_i32_0 = arith.constant 0 : i32
    %6 = vector.broadcast %c0_i32_0 : i32 to vector<1x64xi32>
    %7 = arith.cmpi ne, %5, %6 : vector<1x64xi32>
    %c0_i32_1 = arith.constant 0 : i32
    %8 = vector.broadcast %c0_i32_1 : i32 to vector<1x64xi32>
    %9 = arith.cmpi slt, %5, %8 : vector<1x64xi32>
    %c0_i32_2 = arith.constant 0 : i32
    %10 = arith.cmpi slt, %3, %c0_i32_2 : i32
    %11 = vector.broadcast %10 : i1 to vector<1x64xi1>
    %12 = vector.broadcast %11 : vector<1x64xi1> to vector<1x64xi1>
    %13 = arith.xori %9, %12 : vector<1x64xi1>
    %14 = arith.andi %13, %7 : vector<1x64xi1>
    %15 = vector.broadcast %3 : i32 to vector<1x64xi32>
    %16 = arith.addi %5, %15 : vector<1x64xi32>
    %17 = arith.select %14, %16, %5 : vector<1x64xi1>, vector<1x64xi32>
    %c2_i32 = arith.constant 2 : i32
    %c0_i32_3 = arith.constant 0 : i32
    %18 = arith.cmpi eq, %c2_i32, %c0_i32_3 : i32
    %c1_i32_4 = arith.constant 1 : i32
    %19 = arith.select %18, %c1_i32_4, %c2_i32 : i32
    %20 = vector.broadcast %19 : i32 to vector<1x64xi32>
    %21 = arith.remsi %17, %20 : vector<1x64xi32>
    %c0_i32_5 = arith.constant 0 : i32
    %22 = vector.broadcast %c0_i32_5 : i32 to vector<1x64xi32>
    %23 = arith.cmpi ne, %21, %22 : vector<1x64xi32>
    %c0_i32_6 = arith.constant 0 : i32
    %24 = vector.broadcast %c0_i32_6 : i32 to vector<1x64xi32>
    %25 = arith.cmpi slt, %21, %24 : vector<1x64xi32>
    %c0_i32_7 = arith.constant 0 : i32
    %26 = arith.cmpi slt, %19, %c0_i32_7 : i32
    %27 = vector.broadcast %26 : i1 to vector<1x64xi1>
    %28 = vector.broadcast %27 : vector<1x64xi1> to vector<1x64xi1>
    %29 = arith.xori %25, %28 : vector<1x64xi1>
    %30 = arith.andi %29, %23 : vector<1x64xi1>
    %31 = vector.broadcast %19 : i32 to vector<1x64xi32>
    %32 = arith.addi %21, %31 : vector<1x64xi32>
    %33 = arith.select %30, %32, %21 : vector<1x64xi1>, vector<1x64xi32>
    %34 = arith.subi %17, %33 : vector<1x64xi32>
    %35 = arith.sitofp %34 : vector<1x64xi32> to vector<1x64xf32>
    %cst = arith.constant -0.287823141 : f32
    %36 = vector.broadcast %cst : f32 to vector<1x64xf32>
    %37 = arith.mulf %35, %36 : vector<1x64xf32>
    %38 = math.exp %37 : vector<1x64xf32>
    %39 = arith.sitofp %33 : vector<1x64xi32> to vector<1x64xf32>
    %cst_8 = arith.constant 1.57079637 : f32
    %40 = vector.broadcast %cst_8 : f32 to vector<1x64xf32>
    %41 = arith.mulf %39, %40 : vector<1x64xf32>
    %42 = tpu.iota {dimensions = array<i32: 0>} : vector<8x1xi32>
    %43 = vector.broadcast %0 : i32 to vector<8x1xi32>
    %44 = arith.addi %42, %43 : vector<8x1xi32>
    %45 = arith.sitofp %44 : vector<8x1xi32> to vector<8x1xf32>
    %46 = vector.broadcast %45 : vector<8x1xf32> to vector<8x64xf32>
    %47 = vector.broadcast %38 : vector<1x64xf32> to vector<8x64xf32>
    %48 = arith.mulf %46, %47 : vector<8x64xf32>
    %49 = vector.broadcast %41 : vector<1x64xf32> to vector<8x64xf32>
    %50 = arith.addf %48, %49 : vector<8x64xf32>
    %51 = math.sin %50 : vector<8x64xf32>
    %c0 = arith.constant 0 : index
    %c0_9 = arith.constant 0 : index
    %52 = vector.load %arg2[%c0, %c0_9] : memref<8x64xf32, #tpu.memory_space<vmem>>, vector<8x64xf32>
    %53 = arith.addf %52, %51 : vector<8x64xf32>
    %c0_10 = arith.constant 0 : index
    %c0_11 = arith.constant 0 : index
    %54 = vector.load %arg3[%c0_10, %c0_11] : memref<8x64xf32, #tpu.memory_space<vmem>>, vector<8x64xf32>
    tpu.vector_store %arg3[%c0_10, %c0_11], %53 {strides = array<i32>} : memref<8x64xf32, #tpu.memory_space<vmem>>, vector<8x64xf32>,
    return
  }
  func.func @transform_0(%arg0: i32, %arg1: i32) -> (i32, i32) {
    %c0_i32 = arith.constant 0 : i32
    return %arg0, %arg1 : i32, i32
  }
  func.func @transform_1(%arg0: i32, %arg1: i32) -> (i32, i32) {
    %c0_i32 = arith.constant 0 : i32
    return %arg0, %arg1 : i32, i32
  }
}

</mosaic_0001>

<llo_original>
// kernel: tpu_custom_call.1
$region0: #{tpu_custom_call.1}
  #allocation0 [shape = 'u32[]', space=smem, size = 0x4, offset = 0x4, fixed_abs, tag = 'smem constant byte address 0x4 - core index']
  #allocation1 [shape = 'u32[144,128]{1,0:T(1,128)}', space=vmem, size = 0x12000, scoped, tag = 'internal scratch']
  %s0 = inlined_call_operand.hbm [shape: f32[8,64], index: 0, kind: input, shape index: {}]
  %s1 = inlined_call_operand.hbm [shape: f32[8,64], index: 1, kind: output, shape index: {}]
  %s2 = sld [smem:[#allocation0]]
  $region18: #{tpu_custom_call.1} parent=0
    _
  %s4 = ssub.s32 1, %s2
  %s5 = scalar_select 0, %s4, %s2
  $region1: #{tpu_custom_call.1} parent=0
    #allocation2 [shape = 'u8[4096]{0}', space=vmem, size = 0x1000, scoped, tag = 'input window, operand 0, single buffered']
    #allocation3 [shape = 's32[1]{0}', space=sflag, size = 0x4, scoped, tag = 'scoped memory for tpu_custom_call.1']
    #allocation4 [shape = 's32[1]{0}', space=sflag, size = 0x4, scoped, tag = 'scoped memory for tpu_custom_call.1']
    #allocation5 [shape = 'u8[4096]{0}', space=vmem, size = 0x1000, scoped, tag = 'output window, operand 0, single buffered']
    %6 = vsyncpa [#allocation3], 0
    %7 = vsyncpa [#allocation4], 0
    // Predicated region
    $region2: #{tpu_custom_call.1} parent=1 // pred_check
      _
    $region3: #{tpu_custom_call.1} parent=1 // pred_check_branch
      %9 = sbr.rel (0) target = $region5
    $region4: #{tpu_custom_call.1} parent=1 // pred_region
      %s11 = ssub.s32 128, 128
      %12 = vsyncadd [#allocation3], %s11
      %s14 = sshll.u32 [#allocation2], 4
      %s15 = int_to_ptr.vmem [resolvable:$true] %s14
      %17 = dma.hbm_to_vmem [thread:$0]  %s0, 128, %s15, [#allocation3]
    $region5: #{tpu_custom_call.1} parent=1 // pred_fallthru
      _
    // Predicated region
    $region6: #{tpu_custom_call.1} parent=1 // pred_check
      _
    $region7: #{tpu_custom_call.1} parent=1 // pred_check_branch
      %19 = sbr.rel (0) target = $region9
    $region8: #{tpu_custom_call.1} parent=1 // pred_region
      %20 = dma.done [#allocation3], 128
    $region9: #{tpu_custom_call.1} parent=1 // pred_fallthru
      _
    %s21 = smul.u32 0, 8
    %v22 = vlaneseq
    %v23 = vand.u32 %v22, 127
    %vm24 = vcmp.lt.s32.totalorder %v23, 0
    %v25 = vsub.s32 0, %v23
    %v26 = vsel %vm24, %v25, %v23
    %v27 = vshrl.u32 %v26, 5
    %v28 = vand.u32 %v26, 31
    %v29 = vsub.s32 0, %v28
    %v30 = vsel %vm24, %v29, %v28
    %vm31 = vcmp.ne.s32.totalorder %v30, 0
    %vm32 = vcmp.lt.s32.totalorder %v30, 0
    %vm33 = vmand %vm32, %vm31
    %v34 = vadd.s32 %v30, 32
    %v35 = vsel %vm33, %v34, %v30
    %vm36 = vcmp.lt.s32.totalorder %v35, 0
    %v37 = vsub.s32 0, %v35
    %v38 = vsel %vm36, %v37, %v35
    %v39 = vshrl.u32 %v38, 1
    %v40 = vand.u32 %v38, 1
    %v41 = vsub.s32 0, %v40
    %v42 = vsel %vm36, %v41, %v40
    %vm43 = vcmp.ne.s32.totalorder %v42, 0
    %vm44 = vcmp.lt.s32.totalorder %v42, 0
    %vm45 = vmand %vm44, %vm43
    %v46 = vadd.s32 %v42, 2
    %v47 = vsel %vm45, %v46, %v42
    %v48 = vsub.s32 %v35, %v47
    %v49 = vcvt.s32.f32 %v48
    %v50 = vmul.f32 %v49, -0.28782314
    %v51 = vmul.f32 %v50, 1.442695
    %v52 = vpow.pop %v51
    %v53 = vcvt.s32.f32 %v47
    %v54 = vmul.f32 %v53, 1.5707964
    %v55 = vlaneseq
    %v56 = vshrl.u32 %v55, 7
    %v57 = vstv %s21
    %v58 = vadd.s32 %v56, %v57
    %v59 = vcvt.s32.f32 %v58
    %v60 = vmul.f32 %v59, %v52
    %v61 = vadd.f32 %v60, %v54
    %v62 = vand.u32 2147483647, %v61
    %vm63 = vcmp.le.f32.partialorder %v62, 0.7853982
    %vm64 = vcmp.lt.s32.totalorder %v61, 0
    %v65 = vand.u32 %v61, 2139095040
    %v66 = vshrl.u32 %v65, 23
    %v67 = vsub.s32 %v66, 127
    %v68 = vand.u32 2147483647, %v61
    %v69 = vand.u32 %v68, 8388607
    %v70 = vor.u32 %v69, 8388608
    %v71 = vsub.s32 0, %v70
    %v72 = vadd.s32 %v67, 1
    %vm73 = vcmp.gt.s32.totalorder %v72, 0
    %v74 = vsel %vm73, %v72, 0
    %v75 = vshrl.u32 %v74, 5
    %v76 = vand.u32 %v74, 31
    %v77 = vsub.s32 32, %v76
    %v78 = vshrl.u32 683565275, %v77
    %v79 = vshll.u32 683565275, %v76
    %v80 = vshrl.u32 2475754826, %v77
    %v81 = vor.u32 %v79, %v80
    %v82 = vshll.u32 2475754826, %v76
    %v83 = vshrl.u32 2131351028, %v77
    %v84 = vor.u32 %v82, %v83
    %v85 = vshll.u32 2131351028, %v76
    %v86 = vshrl.u32 2102212464, %v77
    %v87 = vor.u32 %v85, %v86
    %v88 = vshll.u32 2102212464, %v76
    %v89 = vshrl.u32 920167782, %v77
    %v90 = vor.u32 %v88, %v89
    %v91 = vshll.u32 920167782, %v76
    %v92 = vshrl.u32 1326507024, %v77
    %v93 = vor.u32 %v91, %v92
    %vm94 = vcmp.lt.s32.totalorder %v75, 1
    %vm95 = vcmp.lt.s32.totalorder %v75, 2
    %vm96 = vcmp.lt.s32.totalorder %v75, 3
    %vm97 = vcmp.lt.s32.totalorder %v75, 4
    %v98 = vsel %vm94, %v78, %v81
    %v99 = vsel %vm97, %v87, 2102212464
    %v100 = vsel %vm96, %v84, %v99
    %v101 = vsel %vm95, %v98, %v100
    %v102 = vsel %vm94, %v81, %v84
    %v103 = vsel %vm97, %v90, 920167782
    %v104 = vsel %vm96, %v87, %v103
    %v105 = vsel %vm95, %v102, %v104
    %v106 = vsel %vm94, %v84, %v87
    %v107 = vsel %vm97, %v93, 1326507024
    %v108 = vsel %vm96, %v90, %v107
    %v109 = vsel %vm95, %v106, %v108
    %v110 = vshll.u32 %v70, 8
    %v111 = vmul.u32.u64.compose %v110, %v109
    %v112 = vextract.low.u32 %v111
    %v113 = vextract.high.u32 %v111
    %v114 = vmul.u32.u64.compose %v110, %v105
    %v115 = vextract.low.u32 %v114
    %v116 = vextract.high.u32 %v114
    %v117 = vmul.u32 %v110, %v101
    %v118 = vadd.s32 %v113, %v115
    %vm119 = vc.u32 %v113, %v115
    %v120 = vadd.s32 %v116, 1
    %v121 = vsel %vm119, %v120, %v116
    %v122 = vadd.s32 %v117, %v121
    %v123 = vadd.s32 %v122, 536870912
    %v124 = vshrl.u32 %v123, 30
    %v125 = vshll.u32 %v124, 30
    %v126 = vsub.s32 %v122, %v125
    %vm127 = vcmp.lt.s32.totalorder %v126, 0
    %v128 = vsub.s32 0, %v126
    %v129 = vsel %vm127, %v128, %v126
    %v130 = vclz %v129
    %v131 = vsub.s32 %v130, 2
    %vm132 = vcmp.gt.s32.totalorder 0, %v131
    %v133 = vsel %vm132, 0, %v131
    %v134 = vsub.s32 32, %v133
    %v135 = vshll.u32 %v126, %v133
    %v136 = vshrl.u32 %v118, %v134
    %v137 = vor.u32 %v135, %v136
    %v138 = vsub.s32 4294967266, %v133
    %v139 = vadd.s32 %v138, 127
    %v140 = vshll.u32 %v139, 23
    %v141 = vor.u32 4788187, %v140
    %v142 = vand.u32 2147483647, %v141
    %v144 = vcvt.s32.f32 %v137
    %v145 = vmul.f32 %v144, %v142
    %v146 = vxor.u32 %v145, 2147483648
    %v147 = vsel %vm64, %v146, %v145
    %v148 = vsub.s32 4, %v124
    %v149 = vsel %vm64, %v148, %v124
    %v150 = vsel %vm63, %v61, %v147
    %v151 = vsel %vm63, 0, %v149
    %v152 = vcosq.f32.pop %v150
    %v153 = vsinq.f32.pop %v150
    %vm154 = vweird.f32 %v61
    %v155 = vadd.s32 %v151, 3
    %v156 = vand.u32 %v155, 3
    %vm157 = vcmp.lt.s32.totalorder %v156, 2
    %vm158 = vcmp.eq.s32.totalorder %v156, 0
    %v159 = vxor.u32 %v153, 2147483648
    %v160 = vsel %vm158, %v152, %v159
    %vm161 = vcmp.eq.s32.totalorder %v156, 2
    %v162 = vxor.u32 %v152, 2147483648
    %v163 = vsel %vm161, %v162, %v153
    %v164 = vsel %vm157, %v160, %v163
    %v165 = vsel %vm154, nan, %v164
    %v166 = vld [vmem:[#allocation2] sm:$0xff]
    %v167 = vadd.f32 %v166, %v165
    %vm168 = vcmask 523264
    %169 = vst.msk [vmem:[#allocation5] sm:$0xff] %vm168, %v167
    // Predicated region
    $region10: #{tpu_custom_call.1} parent=1 // pred_check
      _
    $region11: #{tpu_custom_call.1} parent=1 // pred_check_branch
      %171 = sbr.rel (0) target = $region13
    $region12: #{tpu_custom_call.1} parent=1 // pred_region
      %s173 = ssub.s32 128, 128
      %174 = vsyncadd [#allocation4], %s173
      %s176 = sshll.u32 [#allocation5], 4
      %s177 = int_to_ptr.vmem [resolvable:$true] %s176
      %179 = dma.vmem_to_hbm [thread:$0]  %s177, 128, %s1, [#allocation4]
    $region13: #{tpu_custom_call.1} parent=1 // pred_fallthru
      _
    // Predicated region
    $region14: #{tpu_custom_call.1} parent=1 // pred_check
      _
    $region15: #{tpu_custom_call.1} parent=1 // pred_check_branch
      %181 = sbr.rel (0) target = $region17
    $region16: #{tpu_custom_call.1} parent=1 // pred_region
      %182 = dma.done [#allocation4], 128
    $region17: #{tpu_custom_call.1} parent=1 // pred_fallthru
      _
    %183 = vsyncpa [#allocation3], 1
    %184 = vsyncpa [#allocation4], 1

</llo_original>
